<compile_context>
chip_gen: v7x
topology: tpu7x:2x2x1
jax: 0.10.0
libtpu: 0.0.40
codegen_flags: <defaults>
</compile_context>

<pallas_src>
import math
import functools

import jax
import jax.numpy as jnp
from jax import lax
from jax.experimental import pallas as pl
from jax.experimental.pallas import tpu as pltpu


# ---------------------------------------------------------------------------
# Fused Pallas kernel: (pw2 @ pw1) 1x1 conv  +  depthwise KxK conv + bias
# ---------------------------------------------------------------------------

def _bsconv_fused_kernel(x_ref, wf_ref, wdw_ref, b_ref, o_ref, y_scr, z_scr,
                         *, kh, kw, stride, dil, wp, ho, wo, acc_len):
    """One (batch image, Cout tile) block.

    x_ref  : (1, Cin, Sp)        zero-padded input, spatial flattened on lanes
    wf_ref : (TC, Cin)           fused pointwise weights (pw2 @ pw1)
    wdw_ref: (TC, KH*KW)         depthwise taps, flattened
    b_ref  : (TC, 1)             depthwise bias (f32)
    o_ref  : (1, TC, Ho*Wo)      lane-dense flat output block
    y_scr  : (TC, Sp)      f32   pointwise result (never leaves VMEM)
    z_scr  : (TC, acc_len) f32   depthwise accumulator, padded-row flat layout
    """
    tc = y_scr.shape[0]

    # ---- stage 1: both 1x1 convs as ONE lane-dense MXU matmul --------------
    y_scr[...] = jnp.dot(wf_ref[...], x_ref[0],
                         preferred_element_type=jnp.float32)

    # ---- stage 2: depthwise KxK conv in the flat padded-row layout ---------
    # For tap (i, j):  z[p] += w[i, j] * y[p + (i*Wp + j)*dil].
    # Valid outputs live at p = r*stride*Wp + c*stride (r < Ho, c < Wo); the
    # remaining columns wrap into the next image row and are never copied out.
    # Every tap load is a contiguous full-lane-width slice -> no masked loads
    # even when W << 128.  The accumulator starts at the broadcast bias.
    z_scr[...] = jnp.broadcast_to(b_ref[...].astype(jnp.float32), (tc, acc_len))
    w = wdw_ref[...].astype(jnp.float32)                         # (TC, KH*KW)
    for i in range(kh):                                          # static tap loops
        for j in range(kw):
            off = (i * wp + j) * dil
            wt = w[:, i * kw + j:i * kw + j + 1]                 # (TC, 1) splat
            z_scr[...] = z_scr[...] + wt * y_scr[:, off:off + acc_len]

    # ---- stage 3: compact valid columns into the lane-dense output block ---
    # One static row slice per output row (for stride > 1 this is the only
    # place a lane-strided access happens: once per row, not once per tap).
    for r in range(ho):
        base = r * stride * wp
        if stride == 1:
            row = z_scr[:, base:base + wo]
        else:
            band = z_scr[:, base:base + (wo - 1) * stride + 1]
            row = lax.slice(band, (0, 0), (tc, (wo - 1) * stride + 1),
                            (1, stride))
        o_ref[0, :, r * wo:(r + 1) * wo] = row.astype(o_ref.dtype)


# ---------------------------------------------------------------------------
# VMEM sizing helpers
# ---------------------------------------------------------------------------

def _pad_up(v, m):
    return -(-v // m) * m


def _buf_bytes(shape, itemsize):
    """Conservative VMEM footprint of one buffer ((8,128) padding of last 2 dims)."""
    dims = list(shape)
    dims[-1] = _pad_up(dims[-1], 128)
    if len(dims) >= 2:
        dims[-2] = _pad_up(dims[-2], 8)
    n = 1
    for d_ in dims:
        n *= d_
    return n * itemsize


# ---------------------------------------------------------------------------
# Module wrapper (parameter setup + glue)
# ---------------------------------------------------------------------------

class BlueprintSeparableSConv2dPallas:
    def __init__(self, in_channels, out_channels, kernel_size, stride=1,
                 padding=0, dilation=1, bias=True, ratio=0.25,
                 min_internal_channels=4, key=None):
        assert 0.0 <= ratio <= 1.0
        self.in_channels = in_channels
        self.out_channels = out_channels
        self.mid_channels = min(in_channels,
                                max(min_internal_channels,
                                    math.ceil(ratio * in_channels)))
        kh, kw = (kernel_size, kernel_size) if isinstance(kernel_size, int) else kernel_size
        ph, pw_ = (padding, padding) if isinstance(padding, int) else padding
        self.kh, self.kw = kh, kw
        self.ph, self.pw = ph, pw_
        self.stride = stride
        self.dilation = dilation

        if key is None:
            key = jax.random.PRNGKey(0)
        k1, k2, k3, k4 = jax.random.split(key, 4)
        # Deterministic synthetic parameters (shapes match the nn.Conv2d weights).
        # pw1_conv.weight: (mid, in, 1, 1) -> stored (mid, in)
        self.w_pw1 = 0.1 * jax.random.normal(k1, (self.mid_channels, in_channels),
                                             jnp.float32)
        # pw2_conv.weight: (out, mid, 1, 1) -> stored (out, mid)
        self.w_pw2 = 0.1 * jax.random.normal(k2, (out_channels, self.mid_channels),
                                             jnp.float32)
        # dw_conv.weight: (out, 1, kh, kw)
        self.w_dw = 0.1 * jax.random.normal(k3, (out_channels, 1, kh, kw),
                                            jnp.float32)
        # dw_conv.bias: (out,)
        self.b_dw = (0.1 * jax.random.normal(k4, (out_channels,), jnp.float32)
                     if bias else jnp.zeros((out_channels,), jnp.float32))

        # --- hoisted weight prep (done once, never per call) ---
        # pw1/pw2 are bias-free + linear -> fold into a single (Cout, Cin) matrix.
        # The op is HBM-bound, so any extra MXU FLOPs of the folded form are free
        # and we save one matmul and the Cmid-sized intermediate.
        self.w_fused = jnp.dot(self.w_pw2, self.w_pw1,
                               precision=lax.Precision.HIGHEST)      # (Cout, Cin)
        self.w_dw_flat = self.w_dw.reshape(out_channels, kh * kw)    # (Cout, KH*KW)
        self.b_col = self.b_dw.reshape(out_channels, 1)              # (Cout, 1) f32

    def __call__(self, x_nchw):
        N, Cin, H, W = x_nchw.shape
        assert Cin == self.in_channels
        Cout = self.out_channels
        dtype = x_nchw.dtype
        isz = dtype.itemsize
        s, d = self.stride, self.dilation
        kh, kw = self.kh, self.kw
        ph, pw_ = self.ph, self.pw

        Hp, Wp = H + 2 * ph, W + 2 * pw_
        Ho = (Hp - d * (kh - 1) - 1) // s + 1
        Wo = (Wp - d * (kw - 1) - 1) // s + 1
        Sp = Hp * Wp
        # Flat-layout accumulator length: covers every valid output position while
        # keeping every tap slice (offset <= ((kh-1)*Wp + (kw-1))*d) in bounds.
        acc_len = Sp - ((kh - 1) * Wp + (kw - 1)) * d

        # Zero-pad the *input*: the pointwise convs are bias-free and linear, so
        # padding before them == padding the (larger) Cout intermediate after.
        xp = x_nchw
        if ph or pw_:
            xp = jnp.pad(x_nchw, ((0, 0), (0, 0), (ph, ph), (pw_, pw_)))
        xp = xp.reshape(N, Cin, Sp)            # row-major flatten: free

        # Weights in the input dtype (native MXU bf16 when x is bf16); f32 accum.
        wf = self.w_fused.astype(dtype)
        wdw = self.w_dw_flat.astype(dtype)
        bcol = self.b_col                      # f32 for the accumulator init

        # ---- generation-aware VMEM budget (v7x: 64 MiB/TC, v5e/v6e: 128 MiB) ----
        try:
            info = pltpu.get_tpu_info()
            vmem_phys = int(getattr(info, "vmem_capacity_bytes", 0) or 0) or (128 << 20)
        except Exception:
            vmem_phys = 128 << 20
        vmem_limit = min(vmem_phys * 3 // 4, 96 << 20)   # explicit scoped limit
        budget = min(vmem_phys // 4, 32 << 20)           # per-block working set

        ktaps = kh * kw

        def block_bytes(tc):
            b = 2 * _buf_bytes((1, Cin, Sp), isz)          # x block (double-buffered)
            b += 2 * _buf_bytes((tc, Cin), isz)            # fused pw weights
            b += 2 * _buf_bytes((tc, ktaps), isz)          # dw weights
            b += 2 * _buf_bytes((tc, 1), 4)                # dw bias
            b += 2 * _buf_bytes((1, tc, Ho * Wo), isz)     # output block
            b += _buf_bytes((tc, Sp), 4)                   # pointwise scratch
            b += _buf_bytes((tc, acc_len), 4)              # depthwise accumulator
            return b

        # Channel tile: largest sublane-aligned tile that fits the budget.
        c_align = max(8, 32 // isz)
        cands = [Cout] + list(range((Cout // c_align) * c_align, 0, -c_align))
        tile_c = None
        for c in cands:
            if 0 < c <= Cout and block_bytes(c) <= budget:
                tile_c = c
                break
        if tile_c is None:
            c_min = Cout if Cout <= c_align else c_align
            if block_bytes(c_min) <= vmem_limit - (4 << 20):
                tile_c = c_min
            else:
                # TODO(synk): add a spatially tiled (halo) variant of the fused
                # kernel for feature maps that exceed VMEM at one channel tile.
                raise NotImplementedError(
                    "feature map too large for the single-pass fused kernel")

        kern = functools.partial(_bsconv_fused_kernel, kh=kh, kw=kw, stride=s,
                                 dil=d, wp=Wp, ho=Ho, wo=Wo, acc_len=acc_len)

        out_flat = pl.pallas_call(
            kern,
            out_shape=jax.ShapeDtypeStruct((N, Cout, Ho * Wo), dtype),
            grid=(N, pl.cdiv(Cout, tile_c)),
            in_specs=[
                # x block index is independent of the Cout-tile axis -> fetched
                # once per image (Pallas skips the re-DMA on revisits).
                pl.BlockSpec((1, Cin, Sp), lambda n, c: (n, 0, 0)),
                pl.BlockSpec((tile_c, Cin), lambda n, c: (c, 0)),
                pl.BlockSpec((tile_c, ktaps), lambda n, c: (c, 0)),
                pl.BlockSpec((tile_c, 1), lambda n, c: (c, 0)),
            ],
            out_specs=pl.BlockSpec((1, tile_c, Ho * Wo), lambda n, c: (n, c, 0)),
            scratch_shapes=[pltpu.VMEM((tile_c, Sp), jnp.float32),
                            pltpu.VMEM((tile_c, acc_len), jnp.float32)],
            compiler_params=pltpu.CompilerParams(
                dimension_semantics=("parallel", "parallel"),
                vmem_limit_bytes=vmem_limit),
        )(xp, wf, wdw, bcol)

        # Row-major reshape back to NCHW: free, no wrapper transposes.
        return out_flat.reshape(N, Cout, Ho, Wo)


# ---------------------------------------------------------------------------
# Pure-JAX reference (for correctness check)
# ---------------------------------------------------------------------------

def _reference(mod: BlueprintSeparableSConv2dPallas, x_nchw):
    prec = lax.Precision.HIGHEST
    y = jnp.einsum('nchw,mc->nmhw', x_nchw, mod.w_pw1, precision=prec)
    y = jnp.einsum('nmhw,om->nohw', y, mod.w_pw2, precision=prec)
    out = lax.conv_general_dilated(
        y, mod.w_dw,
        window_strides=(mod.stride, mod.stride),
        padding=[(mod.ph, mod.ph), (mod.pw, mod.pw)],
        rhs_dilation=(mod.dilation, mod.dilation),
        dimension_numbers=('NCHW', 'OIHW', 'NCHW'),
        feature_group_count=mod.out_channels,
        precision=prec)
    return out + mod.b_dw[None, :, None, None]


if __name__ == "__main__":
    key = jax.random.PRNGKey(0)
    kx, kp = jax.random.split(key)

    # Small shapes consistent with the module: N=2, Cin=4, H=W=16,
    # out_channels=8, kernel_size=3, stride=1, padding=1.
    x = jax.random.normal(kx, (2, 4, 16, 16), jnp.float32)

    mod = BlueprintSeparableSConv2dPallas(in_channels=4, out_channels=8,
                                          kernel_size=3, stride=1, padding=1,
                                          dilation=1, bias=True, key=kp)

    out = jax.block_until_ready(mod(x))

    ref = jax.block_until_ready(_reference(mod, x))
    assert out.shape == ref.shape == (2, 8, 16, 16)
    assert jnp.allclose(out, ref, atol=1e-3, rtol=1e-3), float(
        jnp.max(jnp.abs(out - ref)))

    print("KERNEL_OK")
</pallas_src>

<mosaic_0001>
module attributes {stable_mosaic.version = 11 : i64} {
  func.func @_bsconv_fused_kernel(%arg0: i32, %arg1: i32, %arg2: memref<1x4x324xf32, #tpu.memory_space<vmem>>, %arg3: memref<8x4xf32, #tpu.memory_space<vmem>>, %arg4: memref<8x9xf32, #tpu.memory_space<vmem>>, %arg5: memref<8x1xf32, #tpu.memory_space<vmem>>, %arg6: memref<1x8x256xf32, #tpu.memory_space<vmem>>, %arg7: memref<8x324xf32, #tpu.memory_space<vmem>>, %arg8: memref<8x286xf32, #tpu.memory_space<vmem>>) attributes {dimension_semantics = [#tpu.dimension_semantics<parallel>, #tpu.dimension_semantics<parallel>], iteration_bounds = array<i64: 2, 1>, scalar_prefetch = 0 : i64, scratch_operands = 2 : i64, tpu.core_type = #tpu.core_type<tc>, window_params = [{transform_indices = @transform_0, window_bounds = array<i64: 1, 4, 324>}, {transform_indices = @transform_1, window_bounds = array<i64: 8, 4>}, {transform_indices = @transform_2, window_bounds = array<i64: 8, 9>}, {transform_indices = @transform_3, window_bounds = array<i64: 8, 1>}, {transform_indices = @transform_4, window_bounds = array<i64: 1, 8, 256>}]} {
    %c0 = arith.constant 0 : index
    %c0_0 = arith.constant 0 : index
    %0 = vector.load %arg3[%c0, %c0_0] : memref<8x4xf32, #tpu.memory_space<vmem>>, vector<8x4xf32>
    %c0_1 = arith.constant 0 : index
    %c0_2 = arith.constant 0 : index
    %c0_3 = arith.constant 0 : index
    %1 = vector.load %arg2[%c0_1, %c0_2, %c0_3] : memref<1x4x324xf32, #tpu.memory_space<vmem>>, vector<1x4x324xf32>
    %2 = vector.shape_cast %1 : vector<1x4x324xf32> to vector<4x324xf32>
    %cst = arith.constant dense<0.000000e+00> : vector<8x324xf32>
    %3 = tpu.matmul %0, %2, %cst {dimension_numbers = #tpu.dot_dimension_numbers<[1], [0], [0], [1], [0, 0, 1, 1], [], []>} : vector<8x4xf32>, vector<4x324xf32>, vector<8x324xf32> -> vector<8x324xf32>
    %c0_4 = arith.constant 0 : index
    %c0_5 = arith.constant 0 : index
    %4 = vector.load %arg7[%c0_4, %c0_5] : memref<8x324xf32, #tpu.memory_space<vmem>>, vector<8x324xf32>
    tpu.vector_store %arg7[%c0_4, %c0_5], %3 {strides = array<i32>} : memref<8x324xf32, #tpu.memory_space<vmem>>, vector<8x324xf32>,
    %c0_6 = arith.constant 0 : index
    %c0_7 = arith.constant 0 : index
    %5 = vector.load %arg5[%c0_6, %c0_7] : memref<8x1xf32, #tpu.memory_space<vmem>>, vector<8x1xf32>
    %6 = vector.shape_cast %5 : vector<8x1xf32> to vector<8x1xf32>
    %7 = vector.broadcast %6 : vector<8x1xf32> to vector<8x286xf32>
    %c0_8 = arith.constant 0 : index
    %c0_9 = arith.constant 0 : index
    %8 = vector.load %arg8[%c0_8, %c0_9] : memref<8x286xf32, #tpu.memory_space<vmem>>, vector<8x286xf32>
    tpu.vector_store %arg8[%c0_8, %c0_9], %7 {strides = array<i32>} : memref<8x286xf32, #tpu.memory_space<vmem>>, vector<8x286xf32>,
    %c0_10 = arith.constant 0 : index
    %c0_11 = arith.constant 0 : index
    %9 = vector.load %arg4[%c0_10, %c0_11] : memref<8x9xf32, #tpu.memory_space<vmem>>, vector<8x9xf32>
    %10 = vector.extract_strided_slice %9 {offsets = [0, 0], sizes = [8, 1], strides = [1, 1]} : vector<8x9xf32> to vector<8x1xf32>
    %c0_12 = arith.constant 0 : index
    %c0_13 = arith.constant 0 : index
    %11 = vector.load %arg8[%c0_12, %c0_13] : memref<8x286xf32, #tpu.memory_space<vmem>>, vector<8x286xf32>
    %c0_14 = arith.constant 0 : index
    %c0_15 = arith.constant 0 : index
    %12 = vector.load %arg7[%c0_14, %c0_15] : memref<8x324xf32, #tpu.memory_space<vmem>>, vector<8x286xf32>
    %13 = vector.broadcast %10 : vector<8x1xf32> to vector<8x286xf32>
    %14 = arith.mulf %13, %12 : vector<8x286xf32>
    %15 = arith.addf %11, %14 : vector<8x286xf32>
    %c0_16 = arith.constant 0 : index
    %c0_17 = arith.constant 0 : index
    %16 = vector.load %arg8[%c0_16, %c0_17] : memref<8x286xf32, #tpu.memory_space<vmem>>, vector<8x286xf32>
    tpu.vector_store %arg8[%c0_16, %c0_17], %15 {strides = array<i32>} : memref<8x286xf32, #tpu.memory_space<vmem>>, vector<8x286xf32>,
    %17 = vector.extract_strided_slice %9 {offsets = [0, 1], sizes = [8, 1], strides = [1, 1]} : vector<8x9xf32> to vector<8x1xf32>
    %c0_18 = arith.constant 0 : index
    %c0_19 = arith.constant 0 : index
    %18 = vector.load %arg8[%c0_18, %c0_19] : memref<8x286xf32, #tpu.memory_space<vmem>>, vector<8x286xf32>
    %c0_20 = arith.constant 0 : index
    %c1 = arith.constant 1 : index
    %19 = vector.load %arg7[%c0_20, %c1] : memref<8x324xf32, #tpu.memory_space<vmem>>, vector<8x286xf32>
    %20 = vector.broadcast %17 : vector<8x1xf32> to vector<8x286xf32>
    %21 = arith.mulf %20, %19 : vector<8x286xf32>
    %22 = arith.addf %18, %21 : vector<8x286xf32>
    %c0_21 = arith.constant 0 : index
    %c0_22 = arith.constant 0 : index
    %23 = vector.load %arg8[%c0_21, %c0_22] : memref<8x286xf32, #tpu.memory_space<vmem>>, vector<8x286xf32>
    tpu.vector_store %arg8[%c0_21, %c0_22], %22 {strides = array<i32>} : memref<8x286xf32, #tpu.memory_space<vmem>>, vector<8x286xf32>,
    %24 = vector.extract_strided_slice %9 {offsets = [0, 2], sizes = [8, 1], strides = [1, 1]} : vector<8x9xf32> to vector<8x1xf32>
    %c0_23 = arith.constant 0 : index
    %c0_24 = arith.constant 0 : index
    %25 = vector.load %arg8[%c0_23, %c0_24] : memref<8x286xf32, #tpu.memory_space<vmem>>, vector<8x286xf32>
    %c0_25 = arith.constant 0 : index
    %c2 = arith.constant 2 : index
    %26 = vector.load %arg7[%c0_25, %c2] : memref<8x324xf32, #tpu.memory_space<vmem>>, vector<8x286xf32>
    %27 = vector.broadcast %24 : vector<8x1xf32> to vector<8x286xf32>
    %28 = arith.mulf %27, %26 : vector<8x286xf32>
    %29 = arith.addf %25, %28 : vector<8x286xf32>
    %c0_26 = arith.constant 0 : index
    %c0_27 = arith.constant 0 : index
    %30 = vector.load %arg8[%c0_26, %c0_27] : memref<8x286xf32, #tpu.memory_space<vmem>>, vector<8x286xf32>
    tpu.vector_store %arg8[%c0_26, %c0_27], %29 {strides = array<i32>} : memref<8x286xf32, #tpu.memory_space<vmem>>, vector<8x286xf32>,
    %31 = vector.extract_strided_slice %9 {offsets = [0, 3], sizes = [8, 1], strides = [1, 1]} : vector<8x9xf32> to vector<8x1xf32>
    %c0_28 = arith.constant 0 : index
    %c0_29 = arith.constant 0 : index
    %32 = vector.load %arg8[%c0_28, %c0_29] : memref<8x286xf32, #tpu.memory_space<vmem>>, vector<8x286xf32>
    %c0_30 = arith.constant 0 : index
    %c18 = arith.constant 18 : index
    %33 = vector.load %arg7[%c0_30, %c18] : memref<8x324xf32, #tpu.memory_space<vmem>>, vector<8x286xf32>
    %34 = vector.broadcast %31 : vector<8x1xf32> to vector<8x286xf32>
    %35 = arith.mulf %34, %33 : vector<8x286xf32>
    %36 = arith.addf %32, %35 : vector<8x286xf32>
    %c0_31 = arith.constant 0 : index
    %c0_32 = arith.constant 0 : index
    %37 = vector.load %arg8[%c0_31, %c0_32] : memref<8x286xf32, #tpu.memory_space<vmem>>, vector<8x286xf32>
    tpu.vector_store %arg8[%c0_31, %c0_32], %36 {strides = array<i32>} : memref<8x286xf32, #tpu.memory_space<vmem>>, vector<8x286xf32>,
    %38 = vector.extract_strided_slice %9 {offsets = [0, 4], sizes = [8, 1], strides = [1, 1]} : vector<8x9xf32> to vector<8x1xf32>
    %c0_33 = arith.constant 0 : index
    %c0_34 = arith.constant 0 : index
    %39 = vector.load %arg8[%c0_33, %c0_34] : memref<8x286xf32, #tpu.memory_space<vmem>>, vector<8x286xf32>
    %c0_35 = arith.constant 0 : index
    %c19 = arith.constant 19 : index
    %40 = vector.load %arg7[%c0_35, %c19] : memref<8x324xf32, #tpu.memory_space<vmem>>, vector<8x286xf32>
    %41 = vector.broadcast %38 : vector<8x1xf32> to vector<8x286xf32>
    %42 = arith.mulf %41, %40 : vector<8x286xf32>
    %43 = arith.addf %39, %42 : vector<8x286xf32>
    %c0_36 = arith.constant 0 : index
    %c0_37 = arith.constant 0 : index
    %44 = vector.load %arg8[%c0_36, %c0_37] : memref<8x286xf32, #tpu.memory_space<vmem>>, vector<8x286xf32>
    tpu.vector_store %arg8[%c0_36, %c0_37], %43 {strides = array<i32>} : memref<8x286xf32, #tpu.memory_space<vmem>>, vector<8x286xf32>,
    %45 = vector.extract_strided_slice %9 {offsets = [0, 5], sizes = [8, 1], strides = [1, 1]} : vector<8x9xf32> to vector<8x1xf32>
    %c0_38 = arith.constant 0 : index
    %c0_39 = arith.constant 0 : index
    %46 = vector.load %arg8[%c0_38, %c0_39] : memref<8x286xf32, #tpu.memory_space<vmem>>, vector<8x286xf32>
    %c0_40 = arith.constant 0 : index
    %c20 = arith.constant 20 : index
    %47 = vector.load %arg7[%c0_40, %c20] : memref<8x324xf32, #tpu.memory_space<vmem>>, vector<8x286xf32>
    %48 = vector.broadcast %45 : vector<8x1xf32> to vector<8x286xf32>
    %49 = arith.mulf %48, %47 : vector<8x286xf32>
    %50 = arith.addf %46, %49 : vector<8x286xf32>
    %c0_41 = arith.constant 0 : index
    %c0_42 = arith.constant 0 : index
    %51 = vector.load %arg8[%c0_41, %c0_42] : memref<8x286xf32, #tpu.memory_space<vmem>>, vector<8x286xf32>
    tpu.vector_store %arg8[%c0_41, %c0_42], %50 {strides = array<i32>} : memref<8x286xf32, #tpu.memory_space<vmem>>, vector<8x286xf32>,
    %52 = vector.extract_strided_slice %9 {offsets = [0, 6], sizes = [8, 1], strides = [1, 1]} : vector<8x9xf32> to vector<8x1xf32>
    %c0_43 = arith.constant 0 : index
    %c0_44 = arith.constant 0 : index
    %53 = vector.load %arg8[%c0_43, %c0_44] : memref<8x286xf32, #tpu.memory_space<vmem>>, vector<8x286xf32>
    %c0_45 = arith.constant 0 : index
    %c36 = arith.constant 36 : index
    %54 = vector.load %arg7[%c0_45, %c36] : memref<8x324xf32, #tpu.memory_space<vmem>>, vector<8x286xf32>
    %55 = vector.broadcast %52 : vector<8x1xf32> to vector<8x286xf32>
    %56 = arith.mulf %55, %54 : vector<8x286xf32>
    %57 = arith.addf %53, %56 : vector<8x286xf32>
    %c0_46 = arith.constant 0 : index
    %c0_47 = arith.constant 0 : index
    %58 = vector.load %arg8[%c0_46, %c0_47] : memref<8x286xf32, #tpu.memory_space<vmem>>, vector<8x286xf32>
    tpu.vector_store %arg8[%c0_46, %c0_47], %57 {strides = array<i32>} : memref<8x286xf32, #tpu.memory_space<vmem>>, vector<8x286xf32>,
    %59 = vector.extract_strided_slice %9 {offsets = [0, 7], sizes = [8, 1], strides = [1, 1]} : vector<8x9xf32> to vector<8x1xf32>
    %c0_48 = arith.constant 0 : index
    %c0_49 = arith.constant 0 : index
    %60 = vector.load %arg8[%c0_48, %c0_49] : memref<8x286xf32, #tpu.memory_space<vmem>>, vector<8x286xf32>
    %c0_50 = arith.constant 0 : index
    %c37 = arith.constant 37 : index
    %61 = vector.load %arg7[%c0_50, %c37] : memref<8x324xf32, #tpu.memory_space<vmem>>, vector<8x286xf32>
    %62 = vector.broadcast %59 : vector<8x1xf32> to vector<8x286xf32>
    %63 = arith.mulf %62, %61 : vector<8x286xf32>
    %64 = arith.addf %60, %63 : vector<8x286xf32>
    %c0_51 = arith.constant 0 : index
    %c0_52 = arith.constant 0 : index
    %65 = vector.load %arg8[%c0_51, %c0_52] : memref<8x286xf32, #tpu.memory_space<vmem>>, vector<8x286xf32>
    tpu.vector_store %arg8[%c0_51, %c0_52], %64 {strides = array<i32>} : memref<8x286xf32, #tpu.memory_space<vmem>>, vector<8x286xf32>,
    %66 = vector.extract_strided_slice %9 {offsets = [0, 8], sizes = [8, 1], strides = [1, 1]} : vector<8x9xf32> to vector<8x1xf32>
    %c0_53 = arith.constant 0 : index
    %c0_54 = arith.constant 0 : index
    %67 = vector.load %arg8[%c0_53, %c0_54] : memref<8x286xf32, #tpu.memory_space<vmem>>, vector<8x286xf32>
    %c0_55 = arith.constant 0 : index
    %c38 = arith.constant 38 : index
    %68 = vector.load %arg7[%c0_55, %c38] : memref<8x324xf32, #tpu.memory_space<vmem>>, vector<8x286xf32>
    %69 = vector.broadcast %66 : vector<8x1xf32> to vector<8x286xf32>
    %70 = arith.mulf %69, %68 : vector<8x286xf32>
    %71 = arith.addf %67, %70 : vector<8x286xf32>
    %c0_56 = arith.constant 0 : index
    %c0_57 = arith.constant 0 : index
    %72 = vector.load %arg8[%c0_56, %c0_57] : memref<8x286xf32, #tpu.memory_space<vmem>>, vector<8x286xf32>
    tpu.vector_store %arg8[%c0_56, %c0_57], %71 {strides = array<i32>} : memref<8x286xf32, #tpu.memory_space<vmem>>, vector<8x286xf32>,
    %c0_58 = arith.constant 0 : index
    %c0_59 = arith.constant 0 : index
    %73 = vector.load %arg8[%c0_58, %c0_59] : memref<8x286xf32, #tpu.memory_space<vmem>>, vector<8x16xf32>
    %c0_60 = arith.constant 0 : index
    %c0_61 = arith.constant 0 : index
    %c0_62 = arith.constant 0 : index
    %74 = vector.load %arg6[%c0_60, %c0_61, %c0_62] : memref<1x8x256xf32, #tpu.memory_space<vmem>>, vector<1x8x16xf32>
    %75 = vector.shape_cast %74 : vector<1x8x16xf32> to vector<8x16xf32>
    %76 = vector.shape_cast %73 : vector<8x16xf32> to vector<1x8x16xf32>
    tpu.vector_store %arg6[%c0_60, %c0_61, %c0_62], %76 {strides = array<i32>} : memref<1x8x256xf32, #tpu.memory_space<vmem>>, vector<1x8x16xf32>,
    %c0_63 = arith.constant 0 : index
    %c18_64 = arith.constant 18 : index
    %77 = vector.load %arg8[%c0_63, %c18_64] : memref<8x286xf32, #tpu.memory_space<vmem>>, vector<8x16xf32>
    %c0_65 = arith.constant 0 : index
    %c0_66 = arith.constant 0 : index
    %c16 = arith.constant 16 : index
    %78 = vector.load %arg6[%c0_65, %c0_66, %c16] : memref<1x8x256xf32, #tpu.memory_space<vmem>>, vector<1x8x16xf32>
    %79 = vector.shape_cast %78 : vector<1x8x16xf32> to vector<8x16xf32>
    %80 = vector.shape_cast %77 : vector<8x16xf32> to vector<1x8x16xf32>
    tpu.vector_store %arg6[%c0_65, %c0_66, %c16], %80 {strides = array<i32>} : memref<1x8x256xf32, #tpu.memory_space<vmem>>, vector<1x8x16xf32>,
    %c0_67 = arith.constant 0 : index
    %c36_68 = arith.constant 36 : index
    %81 = vector.load %arg8[%c0_67, %c36_68] : memref<8x286xf32, #tpu.memory_space<vmem>>, vector<8x16xf32>
    %c0_69 = arith.constant 0 : index
    %c0_70 = arith.constant 0 : index
    %c32 = arith.constant 32 : index
    %82 = vector.load %arg6[%c0_69, %c0_70, %c32] : memref<1x8x256xf32, #tpu.memory_space<vmem>>, vector<1x8x16xf32>
    %83 = vector.shape_cast %82 : vector<1x8x16xf32> to vector<8x16xf32>
    %84 = vector.shape_cast %81 : vector<8x16xf32> to vector<1x8x16xf32>
    tpu.vector_store %arg6[%c0_69, %c0_70, %c32], %84 {strides = array<i32>} : memref<1x8x256xf32, #tpu.memory_space<vmem>>, vector<1x8x16xf32>,
    %c0_71 = arith.constant 0 : index
    %c54 = arith.constant 54 : index
    %85 = vector.load %arg8[%c0_71, %c54] : memref<8x286xf32, #tpu.memory_space<vmem>>, vector<8x16xf32>
    %c0_72 = arith.constant 0 : index
    %c0_73 = arith.constant 0 : index
    %c48 = arith.constant 48 : index
    %86 = vector.load %arg6[%c0_72, %c0_73, %c48] : memref<1x8x256xf32, #tpu.memory_space<vmem>>, vector<1x8x16xf32>
    %87 = vector.shape_cast %86 : vector<1x8x16xf32> to vector<8x16xf32>
    %88 = vector.shape_cast %85 : vector<8x16xf32> to vector<1x8x16xf32>
    tpu.vector_store %arg6[%c0_72, %c0_73, %c48], %88 {strides = array<i32>} : memref<1x8x256xf32, #tpu.memory_space<vmem>>, vector<1x8x16xf32>,
    %c0_74 = arith.constant 0 : index
    %c72 = arith.constant 72 : index
    %89 = vector.load %arg8[%c0_74, %c72] : memref<8x286xf32, #tpu.memory_space<vmem>>, vector<8x16xf32>
    %c0_75 = arith.constant 0 : index
    %c0_76 = arith.constant 0 : index
    %c64 = arith.constant 64 : index
    %90 = vector.load %arg6[%c0_75, %c0_76, %c64] : memref<1x8x256xf32, #tpu.memory_space<vmem>>, vector<1x8x16xf32>
    %91 = vector.shape_cast %90 : vector<1x8x16xf32> to vector<8x16xf32>
    %92 = vector.shape_cast %89 : vector<8x16xf32> to vector<1x8x16xf32>
    tpu.vector_store %arg6[%c0_75, %c0_76, %c64], %92 {strides = array<i32>} : memref<1x8x256xf32, #tpu.memory_space<vmem>>, vector<1x8x16xf32>,
    %c0_77 = arith.constant 0 : index
    %c90 = arith.constant 90 : index
    %93 = vector.load %arg8[%c0_77, %c90] : memref<8x286xf32, #tpu.memory_space<vmem>>, vector<8x16xf32>
    %c0_78 = arith.constant 0 : index
    %c0_79 = arith.constant 0 : index
    %c80 = arith.constant 80 : index
    %94 = vector.load %arg6[%c0_78, %c0_79, %c80] : memref<1x8x256xf32, #tpu.memory_space<vmem>>, vector<1x8x16xf32>
    %95 = vector.shape_cast %94 : vector<1x8x16xf32> to vector<8x16xf32>
    %96 = vector.shape_cast %93 : vector<8x16xf32> to vector<1x8x16xf32>
    tpu.vector_store %arg6[%c0_78, %c0_79, %c80], %96 {strides = array<i32>} : memref<1x8x256xf32, #tpu.memory_space<vmem>>, vector<1x8x16xf32>,
    %c0_80 = arith.constant 0 : index
    %c108 = arith.constant 108 : index
    %97 = vector.load %arg8[%c0_80, %c108] : memref<8x286xf32, #tpu.memory_space<vmem>>, vector<8x16xf32>
    %c0_81 = arith.constant 0 : index
    %c0_82 = arith.constant 0 : index
    %c96 = arith.constant 96 : index
    %98 = vector.load %arg6[%c0_81, %c0_82, %c96] : memref<1x8x256xf32, #tpu.memory_space<vmem>>, vector<1x8x16xf32>
    %99 = vector.shape_cast %98 : vector<1x8x16xf32> to vector<8x16xf32>
    %100 = vector.shape_cast %97 : vector<8x16xf32> to vector<1x8x16xf32>
    tpu.vector_store %arg6[%c0_81, %c0_82, %c96], %100 {strides = array<i32>} : memref<1x8x256xf32, #tpu.memory_space<vmem>>, vector<1x8x16xf32>,
    %c0_83 = arith.constant 0 : index
    %c126 = arith.constant 126 : index
    %101 = vector.load %arg8[%c0_83, %c126] : memref<8x286xf32, #tpu.memory_space<vmem>>, vector<8x16xf32>
    %c0_84 = arith.constant 0 : index
    %c0_85 = arith.constant 0 : index
    %c112 = arith.constant 112 : index
    %102 = vector.load %arg6[%c0_84, %c0_85, %c112] : memref<1x8x256xf32, #tpu.memory_space<vmem>>, vector<1x8x16xf32>
    %103 = vector.shape_cast %102 : vector<1x8x16xf32> to vector<8x16xf32>
    %104 = vector.shape_cast %101 : vector<8x16xf32> to vector<1x8x16xf32>
    tpu.vector_store %arg6[%c0_84, %c0_85, %c112], %104 {strides = array<i32>} : memref<1x8x256xf32, #tpu.memory_space<vmem>>, vector<1x8x16xf32>,
    %c0_86 = arith.constant 0 : index
    %c144 = arith.constant 144 : index
    %105 = vector.load %arg8[%c0_86, %c144] : memref<8x286xf32, #tpu.memory_space<vmem>>, vector<8x16xf32>
    %c0_87 = arith.constant 0 : index
    %c0_88 = arith.constant 0 : index
    %c128 = arith.constant 128 : index
    %106 = vector.load %arg6[%c0_87, %c0_88, %c128] : memref<1x8x256xf32, #tpu.memory_space<vmem>>, vector<1x8x16xf32>
    %107 = vector.shape_cast %106 : vector<1x8x16xf32> to vector<8x16xf32>
    %108 = vector.shape_cast %105 : vector<8x16xf32> to vector<1x8x16xf32>
    tpu.vector_store %arg6[%c0_87, %c0_88, %c128], %108 {strides = array<i32>} : memref<1x8x256xf32, #tpu.memory_space<vmem>>, vector<1x8x16xf32>,
    %c0_89 = arith.constant 0 : index
    %c162 = arith.constant 162 : index
    %109 = vector.load %arg8[%c0_89, %c162] : memref<8x286xf32, #tpu.memory_space<vmem>>, vector<8x16xf32>
    %c0_90 = arith.constant 0 : index
    %c0_91 = arith.constant 0 : index
    %c144_92 = arith.constant 144 : index
    %110 = vector.load %arg6[%c0_90, %c0_91, %c144_92] : memref<1x8x256xf32, #tpu.memory_space<vmem>>, vector<1x8x16xf32>
    %111 = vector.shape_cast %110 : vector<1x8x16xf32> to vector<8x16xf32>
    %112 = vector.shape_cast %109 : vector<8x16xf32> to vector<1x8x16xf32>
    tpu.vector_store %arg6[%c0_90, %c0_91, %c144_92], %112 {strides = array<i32>} : memref<1x8x256xf32, #tpu.memory_space<vmem>>, vector<1x8x16xf32>,
    %c0_93 = arith.constant 0 : index
    %c180 = arith.constant 180 : index
    %113 = vector.load %arg8[%c0_93, %c180] : memref<8x286xf32, #tpu.memory_space<vmem>>, vector<8x16xf32>
    %c0_94 = arith.constant 0 : index
    %c0_95 = arith.constant 0 : index
    %c160 = arith.constant 160 : index
    %114 = vector.load %arg6[%c0_94, %c0_95, %c160] : memref<1x8x256xf32, #tpu.memory_space<vmem>>, vector<1x8x16xf32>
    %115 = vector.shape_cast %114 : vector<1x8x16xf32> to vector<8x16xf32>
    %116 = vector.shape_cast %113 : vector<8x16xf32> to vector<1x8x16xf32>
    tpu.vector_store %arg6[%c0_94, %c0_95, %c160], %116 {strides = array<i32>} : memref<1x8x256xf32, #tpu.memory_space<vmem>>, vector<1x8x16xf32>,
    %c0_96 = arith.constant 0 : index
    %c198 = arith.constant 198 : index
    %117 = vector.load %arg8[%c0_96, %c198] : memref<8x286xf32, #tpu.memory_space<vmem>>, vector<8x16xf32>
    %c0_97 = arith.constant 0 : index
    %c0_98 = arith.constant 0 : index
    %c176 = arith.constant 176 : index
    %118 = vector.load %arg6[%c0_97, %c0_98, %c176] : memref<1x8x256xf32, #tpu.memory_space<vmem>>, vector<1x8x16xf32>
    %119 = vector.shape_cast %118 : vector<1x8x16xf32> to vector<8x16xf32>
    %120 = vector.shape_cast %117 : vector<8x16xf32> to vector<1x8x16xf32>
    tpu.vector_store %arg6[%c0_97, %c0_98, %c176], %120 {strides = array<i32>} : memref<1x8x256xf32, #tpu.memory_space<vmem>>, vector<1x8x16xf32>,
    %c0_99 = arith.constant 0 : index
    %c216 = arith.constant 216 : index
    %121 = vector.load %arg8[%c0_99, %c216] : memref<8x286xf32, #tpu.memory_space<vmem>>, vector<8x16xf32>
    %c0_100 = arith.constant 0 : index
    %c0_101 = arith.constant 0 : index
    %c192 = arith.constant 192 : index
    %122 = vector.load %arg6[%c0_100, %c0_101, %c192] : memref<1x8x256xf32, #tpu.memory_space<vmem>>, vector<1x8x16xf32>
    %123 = vector.shape_cast %122 : vector<1x8x16xf32> to vector<8x16xf32>
    %124 = vector.shape_cast %121 : vector<8x16xf32> to vector<1x8x16xf32>
    tpu.vector_store %arg6[%c0_100, %c0_101, %c192], %124 {strides = array<i32>} : memref<1x8x256xf32, #tpu.memory_space<vmem>>, vector<1x8x16xf32>,
    %c0_102 = arith.constant 0 : index
    %c234 = arith.constant 234 : index
    %125 = vector.load %arg8[%c0_102, %c234] : memref<8x286xf32, #tpu.memory_space<vmem>>, vector<8x16xf32>
    %c0_103 = arith.constant 0 : index
    %c0_104 = arith.constant 0 : index
    %c208 = arith.constant 208 : index
    %126 = vector.load %arg6[%c0_103, %c0_104, %c208] : memref<1x8x256xf32, #tpu.memory_space<vmem>>, vector<1x8x16xf32>
    %127 = vector.shape_cast %126 : vector<1x8x16xf32> to vector<8x16xf32>
    %128 = vector.shape_cast %125 : vector<8x16xf32> to vector<1x8x16xf32>
    tpu.vector_store %arg6[%c0_103, %c0_104, %c208], %128 {strides = array<i32>} : memref<1x8x256xf32, #tpu.memory_space<vmem>>, vector<1x8x16xf32>,
    %c0_105 = arith.constant 0 : index
    %c252 = arith.constant 252 : index
    %129 = vector.load %arg8[%c0_105, %c252] : memref<8x286xf32, #tpu.memory_space<vmem>>, vector<8x16xf32>
    %c0_106 = arith.constant 0 : index
    %c0_107 = arith.constant 0 : index
    %c224 = arith.constant 224 : index
    %130 = vector.load %arg6[%c0_106, %c0_107, %c224] : memref<1x8x256xf32, #tpu.memory_space<vmem>>, vector<1x8x16xf32>
    %131 = vector.shape_cast %130 : vector<1x8x16xf32> to vector<8x16xf32>
    %132 = vector.shape_cast %129 : vector<8x16xf32> to vector<1x8x16xf32>
    tpu.vector_store %arg6[%c0_106, %c0_107, %c224], %132 {strides = array<i32>} : memref<1x8x256xf32, #tpu.memory_space<vmem>>, vector<1x8x16xf32>,
    %c0_108 = arith.constant 0 : index
    %c270 = arith.constant 270 : index
    %133 = vector.load %arg8[%c0_108, %c270] : memref<8x286xf32, #tpu.memory_space<vmem>>, vector<8x16xf32>
    %c0_109 = arith.constant 0 : index
    %c0_110 = arith.constant 0 : index
    %c240 = arith.constant 240 : index
    %134 = vector.load %arg6[%c0_109, %c0_110, %c240] : memref<1x8x256xf32, #tpu.memory_space<vmem>>, vector<1x8x16xf32>
    %135 = vector.shape_cast %134 : vector<1x8x16xf32> to vector<8x16xf32>
    %136 = vector.shape_cast %133 : vector<8x16xf32> to vector<1x8x16xf32>
    tpu.vector_store %arg6[%c0_109, %c0_110, %c240], %136 {strides = array<i32>} : memref<1x8x256xf32, #tpu.memory_space<vmem>>, vector<1x8x16xf32>,
    return
  }
  func.func @transform_0(%arg0: i32, %arg1: i32) -> (i32, i32, i32) {
    %c0_i32 = arith.constant 0 : i32
    %c0_i32_0 = arith.constant 0 : i32
    %c0_i32_1 = arith.constant 0 : i32
    return %arg0, %c0_i32, %c0_i32_0 : i32, i32, i32
  }
  func.func @transform_1(%arg0: i32, %arg1: i32) -> (i32, i32) {
    %c0_i32 = arith.constant 0 : i32
    %c0_i32_0 = arith.constant 0 : i32
    return %arg1, %c0_i32 : i32, i32
  }
  func.func @transform_2(%arg0: i32, %arg1: i32) -> (i32, i32) {
    %c0_i32 = arith.constant 0 : i32
    %c0_i32_0 = arith.constant 0 : i32
    return %arg1, %c0_i32 : i32, i32
  }
  func.func @transform_3(%arg0: i32, %arg1: i32) -> (i32, i32) {
    %c0_i32 = arith.constant 0 : i32
    %c0_i32_0 = arith.constant 0 : i32
    return %arg1, %c0_i32 : i32, i32
  }
  func.func @transform_4(%arg0: i32, %arg1: i32) -> (i32, i32, i32) {
    %c0_i32 = arith.constant 0 : i32
    %c0_i32_0 = arith.constant 0 : i32
    return %arg0, %arg1, %c0_i32 : i32, i32, i32
  }
}

</mosaic_0001>

<llo_original>
// kernel: tpu_custom_call.1
$region0: #{tpu_custom_call.1}
  #allocation0 [shape = 'u32[]', space=smem, size = 0x4, offset = 0x4, fixed_abs, tag = 'smem constant byte address 0x4 - core index']
  #allocation1 [shape = 'u32[144,128]{1,0:T(1,128)}', space=vmem, size = 0x12000, scoped, tag = 'internal scratch']
  #allocation2 [shape = 'f32[8,324]{1,0:T(8,128)}', space=vmem, size = 0x3000, scoped, tag = 'scratch operand']
  #allocation3 [shape = 'f32[8,286]{1,0:T(8,128)}', space=vmem, size = 0x3000, scoped, tag = 'scratch operand']
  %s0 = inlined_call_operand.hbm [shape: f32[2,4,324], index: 0, kind: input, shape index: {}]
  %s1 = inlined_call_operand.hbm [shape: f32[8,4], index: 1, kind: input, shape index: {}]
  %s2 = inlined_call_operand.hbm [shape: f32[8,9], index: 2, kind: input, shape index: {}]
  %s3 = inlined_call_operand.hbm [shape: f32[8,1], index: 3, kind: input, shape index: {}]
  %s4 = inlined_call_operand.hbm [shape: f32[2,8,256], index: 4, kind: output, shape index: {}]
  %s5 = sld [smem:[#allocation0]]
  $region65: #{tpu_custom_call.1} parent=0
    _
  %s7 = ssub.s32 1, %s5
  %s8 = scalar_select 0, %s7, %s5
  $region1: #{tpu_custom_call.1} parent=0
    #allocation4 [shape = 'u8[12288]{0}', space=vmem, size = 0x3000, scoped, tag = 'input window, operand 0']
    #allocation5 [shape = 's32[2]{0}', space=sflag, size = 0x8, scoped, tag = 'scoped memory for tpu_custom_call.1']
    #allocation6 [shape = 's32[2]{0}', space=sflag, size = 0x8, scoped, tag = 'scoped memory for tpu_custom_call.1']
    #allocation7 [shape = 'u8[4096]{0}', space=vmem, size = 0x1000, scoped, tag = 'input window, operand 1, single buffered']
    #allocation8 [shape = 's32[1]{0}', space=sflag, size = 0x4, scoped, tag = 'scoped memory for tpu_custom_call.1']
    #allocation9 [shape = 'u8[4096]{0}', space=vmem, size = 0x1000, scoped, tag = 'input window, operand 2, single buffered']
    #allocation10 [shape = 'u8[4096]{0}', space=vmem, size = 0x1000, scoped, tag = 'input window, operand 3, single buffered']
    #allocation11 [shape = 's32[1]{0}', space=sflag, size = 0x4, scoped, tag = 'scoped memory for tpu_custom_call.1']
    #allocation12 [shape = 'u8[16384]{0}', space=vmem, size = 0x4000, scoped, tag = 'output window, operand 0']
    %9 = vsyncpa [#allocation5], 0
    %s10 = scalar_lea.sflag [#allocation5], 1
    %11 = vsyncpa %s10, 0
    %12 = vsyncpa [#allocation8], 0
    %13 = vsyncpa [#allocation11], 0
    %14 = vsyncpa [#allocation6], 0
    %s15 = scalar_lea.sflag [#allocation6], 1
    %16 = vsyncpa %s15, 0
    loop: start=0, step=1, limit=4
    $region2: #{tpu_custom_call.1} parent=1 // loop_pre_header
      _
    $region3: #{tpu_custom_call.1} parent=1 // loop_header
      %s18 = sphi 0, %s22
      %p19 = scmp.ge.s32.totalorder %s18, 4
      %s25 = sphi 0, %s37
      %s26 = sphi 0, %s33
      %s27 = sphi 0, %s25
      %s28 = sphi 0, %s26
      %s29 = sphi 0, %s27
      %s30 = sphi 0, %s28
      %s40 = sphi 0, %s42
      %s43 = sphi 0, %s40
      %s44 = sphi 0, %s43
      %s60 = sphi 0, %s44
      %s66 = sphi 0, %s68
      %s69 = sphi 0, %s66
      %s70 = sphi 0, %s69
      %s86 = sphi 0, %s70
      %s92 = sphi 0, %s94
      %s95 = sphi 0, %s92
      %s96 = sphi 0, %s95
      %s112 = sphi 0, %s96
      %s118 = sphi 0, %s120
      %s121 = sphi 0, %s118
      %s122 = sphi 0, %s121
      %s138 = sphi 0, %s122
      %s146 = sphi 0, %s148
      %s149 = sphi 0, %s146
      %s150 = sphi 0, %s149
      %s166 = sphi 0, %s150
    $region4: #{tpu_custom_call.1} parent=1 // loop_header_branch
      %21 = sbr.rel (%p19) target = $region8
    $region5: #{tpu_custom_call.1} parent=1 // loop_body
      %s23 = ssub.s32 %s18, 1
      %s24 = ssub.s32 %s18, 2
      %s31 = sadd.s32 1, %s26
      %p32 = scmp.ge.s32.totalorder %s31, 1
      %s33 = scalar_select %p32, 0, %s31
      %s34 = sadd.s32 1, %s25
      %s35 = scalar_select %p32, %s34, %s25
      %p36 = scmp.ge.s32.totalorder %s35, 2
      %s37 = scalar_select %p36, 0, %s35
      %s38 = ssub.s32 %s25, %s37
      %p39 = scmp.eq.s32.totalorder %s38, 0
      %s41 = sadd.s32 %s40, 1
      %s42 = scalar_select %p39, %s40, %s41
      %p45 = pneg %p39
      %p46 = scmp.eq.s32.totalorder %s18, 1
      %p47 = por %p45, %p46
      %p48 = scmp.ne.s32.totalorder %s40, %s43
      %p49 = scmp.eq.s32.totalorder %s18, 0
      %p50 = por %p48, %p49
      %p51 = scmp.ne.s32.totalorder %s40, %s43
      %p52 = scmp.eq.s32.totalorder %s23, 1
      %p53 = por %p51, %p52
      %p54 = scmp.ne.s32.totalorder %s43, %s44
      %p55 = scmp.eq.s32.totalorder %s23, 0
      %p56 = por %p54, %p55
      %p57 = scmp.ne.s32.totalorder %s43, %s44
      %p58 = scmp.eq.s32.totalorder %s24, 1
      %p59 = por %p57, %p58
      %p61 = scmp.ne.s32.totalorder %s44, %s60
      %p62 = scmp.eq.s32.totalorder %s24, 0
      %p63 = por %p61, %p62
      %s64 = ssub.s32 %s26, %s33
      %p65 = scmp.eq.s32.totalorder %s64, 0
      %s67 = sadd.s32 %s66, 1
      %s68 = scalar_select %p65, %s66, %s67
      %p71 = pneg %p65
      %p72 = scmp.eq.s32.totalorder %s18, 1
      %p73 = por %p71, %p72
      %p74 = scmp.ne.s32.totalorder %s66, %s69
      %p75 = scmp.eq.s32.totalorder %s18, 0
      %p76 = por %p74, %p75
      %p77 = scmp.ne.s32.totalorder %s66, %s69
      %p78 = scmp.eq.s32.totalorder %s23, 1
      %p79 = por %p77, %p78
      %p80 = scmp.ne.s32.totalorder %s69, %s70
      %p81 = scmp.eq.s32.totalorder %s23, 0
      %p82 = por %p80, %p81
      %p83 = scmp.ne.s32.totalorder %s69, %s70
      %p84 = scmp.eq.s32.totalorder %s24, 1
      %p85 = por %p83, %p84
      %p87 = scmp.ne.s32.totalorder %s70, %s86
      %p88 = scmp.eq.s32.totalorder %s24, 0
      %p89 = por %p87, %p88
      %s90 = ssub.s32 %s26, %s33
      %p91 = scmp.eq.s32.totalorder %s90, 0
      %s93 = sadd.s32 %s92, 1
      %s94 = scalar_select %p91, %s92, %s93
      %p97 = pneg %p91
      %p98 = scmp.eq.s32.totalorder %s18, 1
      %p99 = por %p97, %p98
      %p100 = scmp.ne.s32.totalorder %s92, %s95
      %p101 = scmp.eq.s32.totalorder %s18, 0
      %p102 = por %p100, %p101
      %p103 = scmp.ne.s32.totalorder %s92, %s95
      %p104 = scmp.eq.s32.totalorder %s23, 1
      %p105 = por %p103, %p104
      %p106 = scmp.ne.s32.totalorder %s95, %s96
      %p107 = scmp.eq.s32.totalorder %s23, 0
      %p108 = por %p106, %p107
      %p109 = scmp.ne.s32.totalorder %s95, %s96
      %p110 = scmp.eq.s32.totalorder %s24, 1
      %p111 = por %p109, %p110
      %p113 = scmp.ne.s32.totalorder %s96, %s112
      %p114 = scmp.eq.s32.totalorder %s24, 0
      %p115 = por %p113, %p114
      %s116 = ssub.s32 %s26, %s33
      %p117 = scmp.eq.s32.totalorder %s116, 0
      %s119 = sadd.s32 %s118, 1
      %s120 = scalar_select %p117, %s118, %s119
      %p123 = pneg %p117
      %p124 = scmp.eq.s32.totalorder %s18, 1
      %p125 = por %p123, %p124
      %p126 = scmp.ne.s32.totalorder %s118, %s121
      %p127 = scmp.eq.s32.totalorder %s18, 0
      %p128 = por %p126, %p127
      %p129 = scmp.ne.s32.totalorder %s118, %s121
      %p130 = scmp.eq.s32.totalorder %s23, 1
      %p131 = por %p129, %p130
      %p132 = scmp.ne.s32.totalorder %s121, %s122
      %p133 = scmp.eq.s32.totalorder %s23, 0
      %p134 = por %p132, %p133
      %p135 = scmp.ne.s32.totalorder %s121, %s122
      %p136 = scmp.eq.s32.totalorder %s24, 1
      %p137 = por %p135, %p136
      %p139 = scmp.ne.s32.totalorder %s122, %s138
      %p140 = scmp.eq.s32.totalorder %s24, 0
      %p141 = por %p139, %p140
      %s142 = ssub.s32 %s25, %s37
      %s143 = ssub.s32 %s26, %s33
      %s144 = sor.u32 %s142, %s143
      %p145 = scmp.eq.s32.totalorder %s144, 0
      %s147 = sadd.s32 %s146, 1
      %s148 = scalar_select %p145, %s146, %s147
      %p151 = pneg %p145
      %p152 = scmp.eq.s32.totalorder %s18, 1
      %p153 = por %p151, %p152
      %p154 = scmp.ne.s32.totalorder %s146, %s149
      %p155 = scmp.eq.s32.totalorder %s18, 0
      %p156 = por %p154, %p155
      %p157 = scmp.ne.s32.totalorder %s146, %s149
      %p158 = scmp.eq.s32.totalorder %s23, 1
      %p159 = por %p157, %p158
      %p160 = scmp.ne.s32.totalorder %s149, %s150
      %p161 = scmp.eq.s32.totalorder %s23, 0
      %p162 = por %p160, %p161
      %p163 = scmp.ne.s32.totalorder %s149, %s150
      %p164 = scmp.eq.s32.totalorder %s24, 1
      %p165 = por %p163, %p164
      %p167 = scmp.ne.s32.totalorder %s150, %s166
      %p168 = scmp.eq.s32.totalorder %s24, 0
      %p169 = por %p167, %p168
      %p170 = scmp.le.s32.totalorder 1, %s18
      %p171 = scmp.lt.s32.totalorder %s18, 3
      %p172 = pnand %p170, %p171
      %p173 = pneg %p172
      // Predicated region
      $region9: #{tpu_custom_call.1} parent=5 // pred_check
        _
      $region10: #{tpu_custom_call.1} parent=5 // pred_check_branch
        %175 = sbr.rel (%p172) target = $region12
      $region11: #{tpu_custom_call.1} parent=5 // pred_region
        %s176 = ssub.s32 %s18, 1
        // Predicated region
        $region13: #{tpu_custom_call.1} parent=11 // pred_check
          %p177 = pneg %p82
        $region14: #{tpu_custom_call.1} parent=11 // pred_check_branch
          %179 = sbr.rel (%p177) target = $region16
        $region15: #{tpu_custom_call.1} parent=11 // pred_region
          %s181 = ssub.s32 128, 128
          %182 = vsyncadd [#allocation8], %s181
          %s183 = smul.addr %s28, 128
          %s184 = scalar_lea.hbm %s1, %s183
          %s186 = sshll.u32 [#allocation7], 4
          %s187 = int_to_ptr.vmem [resolvable:$true] %s186
          %189 = dma.hbm_to_vmem [thread:$0]  %s184, 128, %s187, [#allocation8]
        $region16: #{tpu_custom_call.1} parent=11 // pred_fallthru
          _
        // Predicated region
        $region17: #{tpu_custom_call.1} parent=11 // pred_check
          %p190 = pneg %p108
        $region18: #{tpu_custom_call.1} parent=11 // pred_check_branch
          %192 = sbr.rel (%p190) target = $region20
        $region19: #{tpu_custom_call.1} parent=11 // pred_region
          %s194 = ssub.s32 128, 128
          %195 = vsyncadd [#allocation8], %s194
          %s196 = smul.addr %s28, 128
          %s197 = scalar_lea.hbm %s2, %s196
          %s199 = sshll.u32 [#allocation9], 4
          %s200 = int_to_ptr.vmem [resolvable:$true] %s199
          %202 = dma.hbm_to_vmem [thread:$0]  %s197, 128, %s200, [#allocation8]
        $region20: #{tpu_custom_call.1} parent=11 // pred_fallthru
          _
        // Predicated region
        $region21: #{tpu_custom_call.1} parent=11 // pred_check
          %p203 = pneg %p134
        $region22: #{tpu_custom_call.1} parent=11 // pred_check_branch
          %205 = sbr.rel (%p203) target = $region24
        $region23: #{tpu_custom_call.1} parent=11 // pred_region
          %s207 = ssub.s32 128, 128
          %208 = vsyncadd [#allocation11], %s207
          %s209 = smul.addr %s28, 128
          %s210 = scalar_lea.hbm %s3, %s209
          %s212 = sshll.u32 [#allocation10], 4
          %s213 = int_to_ptr.vmem [resolvable:$true] %s212
          %215 = dma.hbm_to_vmem [thread:$0]  %s210, 128, %s213, [#allocation11]
        $region24: #{tpu_custom_call.1} parent=11 // pred_fallthru
          _
      $region12: #{tpu_custom_call.1} parent=5 // pred_fallthru
        _
      %p216 = scmp.lt.s32.totalorder %s18, 2
      // Predicated region
      $region25: #{tpu_custom_call.1} parent=5 // pred_check
        %p217 = pneg %p216
      $region26: #{tpu_custom_call.1} parent=5 // pred_check_branch
        %219 = sbr.rel (%p217) target = $region28
      $region27: #{tpu_custom_call.1} parent=5 // pred_region
        // Predicated region
        $region29: #{tpu_custom_call.1} parent=27 // pred_check
          %p220 = pneg %p50
        $region30: #{tpu_custom_call.1} parent=27 // pred_check_branch
          %222 = sbr.rel (%p220) target = $region32
        $region31: #{tpu_custom_call.1} parent=27 // pred_region
          %s223 = sand.u32 %s40, 1
          %s224 = scalar_lea.sflag [#allocation5], %s223
          %s225 = sand.u32 %s40, 1
          %s226 = smul.addr %s225, 12
          %s227 = scalar_lea.vmem [#allocation4], %s226
          %s229 = ssub.s32 192, 192
          %230 = vsyncadd %s224, %s229
          %s231 = smul.addr %s25, 3
          %s232 = smul.addr %s231, 64
          %s233 = scalar_lea.hbm %s0, %s232
          %s235 = sshll.u32 %s227, 4
          %s236 = int_to_ptr.vmem [resolvable:$true] %s235
          %238 = dma.hbm_to_vmem [thread:$0]  %s233, 192, %s236, %s224
        $region32: #{tpu_custom_call.1} parent=27 // pred_fallthru
          _
      $region28: #{tpu_custom_call.1} parent=5 // pred_fallthru
        _
      %p239 = scmp.le.s32.totalorder 1, %s18
      %p240 = scmp.lt.s32.totalorder %s18, 3
      %p241 = pnand %p239, %p240
      %p242 = pneg %p241
      // Predicated region
      $region33: #{tpu_custom_call.1} parent=5 // pred_check
        _
      $region34: #{tpu_custom_call.1} parent=5 // pred_check_branch
        %244 = sbr.rel (%p241) target = $region36
      $region35: #{tpu_custom_call.1} parent=5 // pred_region
        %s245 = ssub.s32 %s18, 1
        %s246 = sand.u32 %s43, 1
        %s247 = scalar_lea.sflag [#allocation5], %s246
        %s248 = sand.u32 %s43, 1
        %s249 = smul.addr %s248, 12
        %s250 = scalar_lea.vmem [#allocation4], %s249
        // Predicated region
        $region37: #{tpu_custom_call.1} parent=35 // pred_check
          %p251 = pneg %p56
        $region38: #{tpu_custom_call.1} parent=35 // pred_check_branch
          %253 = sbr.rel (%p251) target = $region40
        $region39: #{tpu_custom_call.1} parent=35 // pred_region
          %254 = dma.done %s247, 192
        $region40: #{tpu_custom_call.1} parent=35 // pred_fallthru
          _
        // Predicated region
        $region41: #{tpu_custom_call.1} parent=35 // pred_check
          %p255 = pneg %p82
        $region42: #{tpu_custom_call.1} parent=35 // pred_check_branch
          %257 = sbr.rel (%p255) target = $region44
        $region43: #{tpu_custom_call.1} parent=35 // pred_region
          %258 = dma.done [#allocation8], 128
        $region44: #{tpu_custom_call.1} parent=35 // pred_fallthru
          _
        // Predicated region
        $region45: #{tpu_custom_call.1} parent=35 // pred_check
          %p259 = pneg %p108
        $region46: #{tpu_custom_call.1} parent=35 // pred_check_branch
          %261 = sbr.rel (%p259) target = $region48
        $region47: #{tpu_custom_call.1} parent=35 // pred_region
          %262 = dma.done [#allocation8], 128
        $region48: #{tpu_custom_call.1} parent=35 // pred_fallthru
          _
        // Predicated region
        $region49: #{tpu_custom_call.1} parent=35 // pred_check
          %p263 = pneg %p134
        $region50: #{tpu_custom_call.1} parent=35 // pred_check_branch
          %265 = sbr.rel (%p263) target = $region52
        $region51: #{tpu_custom_call.1} parent=35 // pred_region
          %266 = dma.done [#allocation11], 128
        $region52: #{tpu_custom_call.1} parent=35 // pred_fallthru
          _
        %s267 = sand.u32 %s43, 1
        %s268 = scalar_lea.sflag [#allocation5], %s267
        %s269 = sand.u32 %s43, 1
        %s270 = smul.addr %s269, 12
        %s271 = scalar_lea.vmem [#allocation4], %s270
        %p272 = pneg %p56
        %p273 = pneg %p53
        %p274 = pneg %p82
        %p275 = pneg %p79
        %p276 = pneg %p108
        %p277 = pneg %p105
        %p278 = pneg %p134
        %p279 = pneg %p131
        %p280 = pneg %p162
        %p281 = pneg %p159
        %s282 = sand.u32 %s149, 1
        %s283 = scalar_lea.sflag [#allocation6], %s282
        %s284 = sand.u32 %s149, 1
        %s285 = smul.addr %s284, 16
        %s286 = scalar_lea.vmem [#allocation12], %s285
        %v287 = vld [vmem:[#allocation7] sm:$0xff]
        %v288 = vld [vmem:[%s250] sm:$0xff]
        %v289 = vld [vmem:[%s250 + $0x8] sm:$0xf]
        %v292 = vcombine.high %v288, %v288
        %vm293 = vcmask 31744
        %v295 = vsel %vm293, %v287, 0
        %vm297 = vcmask 1043456
        %v298 = vsel %vm297, %v288, 0
        %v300 = vsel %vm297, %v292, 0
        %v302 = vsel %vm297, %v289, 0
        %304 = vmatprep.subr.mxu0 %v300
        %305 = vmatpush1.msra.mxu0 %v298
        %306 = vmatprep.subr.mxu0 0.0
        %307 = vmatpush1.msra.mxu0 0.0
        %308 = vmatprep.subr.mxu0 0.0
        %309 = vmatpush1.msra.mxu0 0.0
        %310 = vmatprep.subr.mxu0 0.0
        %311 = vmatpush1.msra.mxu0 0.0
        %312 = vmatprep.subr.mxu0 0.0
        %313 = vmatpush1.msra.mxu0 0.0
        %314 = vmatprep.subr.mxu0 0.0
        %315 = vmatpush1.msra.mxu0 0.0
        %316 = vmatprep.subr.mxu0 0.0
        %317 = vmatpush1.msra.mxu0 0.0
        %318 = vmatprep.subr.mxu0 0.0
        %319 = vmatpush1.msra.mxu0 0.0
        %320 = vmatprep.subr.mxu0 0.0
        %321 = vmatpush1.msra.mxu0 0.0
        %322 = vmatprep.subr.mxu0 0.0
        %323 = vmatpush1.msra.mxu0 0.0
        %324 = vmatprep.subr.mxu0 0.0
        %325 = vmatpush1.msra.mxu0 0.0
        %326 = vmatprep.subr.mxu0 0.0
        %327 = vmatpush1.msra.mxu0 0.0
        %328 = vmatprep.subr.mxu0 0.0
        %329 = vmatpush1.msra.mxu0 0.0
        %330 = vmatprep.subr.mxu0 0.0
        %331 = vmatpush1.msra.mxu0 0.0
        %332 = vmatprep.subr.mxu0 0.0
        %333 = vmatpush1.msra.mxu0 0.0
        %334 = vmatprep.subr.mxu0 0.0
        %335 = vmatpush1.msra.mxu0 0.0
        %336 = vmatprep.subr.mxu0 0.0
        %337 = vmatpush1.msra.mxu0 0.0
        %338 = vmatprep.subr.mxu0 0.0
        %339 = vmatpush1.msra.mxu0 0.0
        %340 = vmatprep.subr.mxu0 0.0
        %341 = vmatpush1.msra.mxu0 0.0
        %342 = vmatprep.subr.mxu0 0.0
        %343 = vmatpush1.msra.mxu0 0.0
        %344 = vmatprep.subr.mxu0 0.0
        %345 = vmatpush1.msra.mxu0 0.0
        %346 = vmatprep.subr.mxu0 0.0
        %347 = vmatpush1.msra.mxu0 0.0
        %348 = vmatprep.subr.mxu0 0.0
        %349 = vmatpush1.msra.mxu0 0.0
        %350 = vmatprep.subr.mxu0 0.0
        %351 = vmatpush1.msra.mxu0 0.0
        %352 = vmatprep.subr.mxu0 0.0
        %353 = vmatpush1.msra.mxu0 0.0
        %354 = vmatprep.subr.mxu0 0.0
        %355 = vmatpush1.msra.mxu0 0.0
        %356 = vmatprep.subr.mxu0 0.0
        %357 = vmatpush1.msra.mxu0 0.0
        %358 = vmatprep.subr.mxu0 0.0
        %359 = vmatpush1.msra.mxu0 0.0
        %360 = vmatprep.subr.mxu0 0.0
        %361 = vmatpush1.msra.mxu0 0.0
        %362 = vmatprep.subr.mxu0 0.0
        %363 = vmatpush1.msra.mxu0 0.0
        %364 = vmatprep.subr.mxu0 0.0
        %365 = vmatpush1.msra.mxu0 0.0
        %366 = vmatprep.subr.mxu0 0.0
        %367 = vmatpush1.msra.mxu0 0.0
        %368 = vmatprep.mubr.f32.mxu0 0.0
        %369 = vmatmul.mubr.f32.gmra.mrb[0].mxu0 %v295
        %v370 = vpop.f32.mrb[0].mxu0
        %v371 = vadd.f32 0.0, %v370
        %v372 = vpop.f32.mrb[0].mxu0
        %v373 = vadd.f32 0.0, %v372
        %374 = vdwg.mxu0
        %375 = vmatprep.subr.mxu0 0.0
        %376 = vmatpush1.msra.mxu0 %v302
        %377 = vmatprep.subr.mxu0 0.0
        %378 = vmatpush1.msra.mxu0 0.0
        %379 = vmatprep.subr.mxu0 0.0
        %380 = vmatpush1.msra.mxu0 0.0
        %381 = vmatprep.subr.mxu0 0.0
        %382 = vmatpush1.msra.mxu0 0.0
        %383 = vmatprep.subr.mxu0 0.0
        %384 = vmatpush1.msra.mxu0 0.0
        %385 = vmatprep.subr.mxu0 0.0
        %386 = vmatpush1.msra.mxu0 0.0
        %387 = vmatprep.subr.mxu0 0.0
        %388 = vmatpush1.msra.mxu0 0.0
        %389 = vmatprep.subr.mxu0 0.0
        %390 = vmatpush1.msra.mxu0 0.0
        %391 = vmatprep.subr.mxu0 0.0
        %392 = vmatpush1.msra.mxu0 0.0
        %393 = vmatprep.subr.mxu0 0.0
        %394 = vmatpush1.msra.mxu0 0.0
        %395 = vmatprep.subr.mxu0 0.0
        %396 = vmatpush1.msra.mxu0 0.0
        %397 = vmatprep.subr.mxu0 0.0
        %398 = vmatpush1.msra.mxu0 0.0
        %399 = vmatprep.subr.mxu0 0.0
        %400 = vmatpush1.msra.mxu0 0.0
        %401 = vmatprep.subr.mxu0 0.0
        %402 = vmatpush1.msra.mxu0 0.0
        %403 = vmatprep.subr.mxu0 0.0
        %404 = vmatpush1.msra.mxu0 0.0
        %405 = vmatprep.subr.mxu0 0.0
        %406 = vmatpush1.msra.mxu0 0.0
        %407 = vmatprep.subr.mxu0 0.0
        %408 = vmatpush1.msra.mxu0 0.0
        %409 = vmatprep.subr.mxu0 0.0
        %410 = vmatpush1.msra.mxu0 0.0
        %411 = vmatprep.subr.mxu0 0.0
        %412 = vmatpush1.msra.mxu0 0.0
        %413 = vmatprep.subr.mxu0 0.0
        %414 = vmatpush1.msra.mxu0 0.0
        %415 = vmatprep.subr.mxu0 0.0
        %416 = vmatpush1.msra.mxu0 0.0
        %417 = vmatprep.subr.mxu0 0.0
        %418 = vmatpush1.msra.mxu0 0.0
        %419 = vmatprep.subr.mxu0 0.0
        %420 = vmatpush1.msra.mxu0 0.0
        %421 = vmatprep.subr.mxu0 0.0
        %422 = vmatpush1.msra.mxu0 0.0
        %423 = vmatprep.subr.mxu0 0.0
        %424 = vmatpush1.msra.mxu0 0.0
        %425 = vmatprep.subr.mxu0 0.0
        %426 = vmatpush1.msra.mxu0 0.0
        %427 = vmatprep.subr.mxu0 0.0
        %428 = vmatpush1.msra.mxu0 0.0
        %429 = vmatprep.subr.mxu0 0.0
        %430 = vmatpush1.msra.mxu0 0.0
        %431 = vmatprep.subr.mxu0 0.0
        %432 = vmatpush1.msra.mxu0 0.0
        %433 = vmatprep.subr.mxu0 0.0
        %434 = vmatpush1.msra.mxu0 0.0
        %435 = vmatprep.subr.mxu0 0.0
        %436 = vmatpush1.msra.mxu0 0.0
        %437 = vmatprep.subr.mxu0 0.0
        %438 = vmatpush1.msra.mxu0 0.0
        %439 = vmatprep.mubr.f32.mxu0 0.0
        %440 = vmatmul.mubr.f32.gmra.mrb[0].mxu0 %v295
        %v441 = vpop.f32.mrb[0].mxu0
        %v442 = vadd.f32 0.0, %v441
        %v443 = vpop.f32.mrb[0].mxu0
        %444 = vdwg.mxu0
        %445 = vst [vmem:[#allocation2] sm:$0xff] %v371
        %446 = vst [vmem:[#allocation2 + $0x8] sm:$0xff] %v373
        %vm447 = vcmask 556032
        %448 = vst.msk [vmem:[#allocation2 + $0x10] sm:$0xff] %vm447, %v442
        %v449 = vld [vmem:[#allocation10] sm:$0xff]
        %451 = vset.pattern.permute.xlu0 0
        %452 = vperm.xlu0 %451, %v449
        %v453 = vpop.permute.xlu0 %452
        %455 = vst [vmem:[#allocation3] sm:$0xff] %v453
        %456 = vst [vmem:[#allocation3 + $0x8] sm:$0xff] %v453
        %vm457 = vcmask 244736
        %458 = vst.msk [vmem:[#allocation3 + $0x10] sm:$0xff] %vm457, %v453
        %v459 = vld [vmem:[#allocation9] sm:$0xff]
        %v460 = vld [vmem:[#allocation3] sm:$0xff]
        %v461 = vld [vmem:[#allocation3 + $0x8] sm:$0xff]
        %v462 = vld [vmem:[#allocation3 + $0x10] sm:$0xff]
        %v463 = vld [vmem:[#allocation2] sm:$0xff]
        %v464 = vld [vmem:[#allocation2 + $0x8] sm:$0xff]
        %v465 = vld [vmem:[#allocation2 + $0x10] sm:$0xff]
        %467 = vset.pattern.permute.xlu0 0
        %468 = vperm.xlu0 %467, %v459
        %v469 = vpop.permute.xlu0 %468
        %v471 = vmul.f32 %v469, %v463
        %v472 = vmul.f32 %v469, %v464
        %v473 = vmul.f32 %v469, %v465
        %v474 = vadd.f32 %v460, %v471
        %v475 = vadd.f32 %v461, %v472
        %v476 = vadd.f32 %v462, %v473
        %477 = vst [vmem:[#allocation3] sm:$0xff] %v474
        %478 = vst [vmem:[#allocation3 + $0x8] sm:$0xff] %v475
        %479 = vst.msk [vmem:[#allocation3 + $0x10] sm:$0xff] %vm457, %v476
        %v480 = vld [vmem:[#allocation3] sm:$0xff]
        %v481 = vld [vmem:[#allocation3 + $0x8] sm:$0xff]
        %v482 = vld [vmem:[#allocation3 + $0x10] sm:$0xff]
        %v483 = vld [vmem:[#allocation2] sm:$0xff]
        %v484 = vld [vmem:[#allocation2 + $0x8] sm:$0xff]
        %v485 = vld [vmem:[#allocation2 + $0x10] sm:$0xff]
        %486 = vset.pattern.permute.xlu0 1
        %487 = vperm.xlu0 %486, %v459
        %v488 = vpop.permute.xlu0 %487
        %v490 = vmul.f32 %v488, %v483
        %v491 = vmul.f32 %v488, %v484
        %v492 = vmul.f32 %v488, %v485
        %496 = vrot.lane.b32.xlu0 %v490, 127
        %v497 = vpop.permute.xlu0 %496
        %498 = vrot.lane.b32.xlu0 %v491, 127
        %v499 = vpop.permute.xlu0 %498
        %500 = vrot.lane.b32.xlu0 %v492, 127
        %v501 = vpop.permute.xlu0 %500
        %vm502 = vcmask 1039360
        %v503 = vsel %vm502, %v497, %v499
        %v504 = vsel %vm502, %v499, %v501
        %v508 = vadd.f32 %v480, %v503
        %v509 = vadd.f32 %v481, %v504
        %v510 = vadd.f32 %v482, %v501
        %511 = vst [vmem:[#allocation3] sm:$0xff] %v508
        %512 = vst [vmem:[#allocation3 + $0x8] sm:$0xff] %v509
        %513 = vst.msk [vmem:[#allocation3 + $0x10] sm:$0xff] %vm457, %v510
        %v514 = vld [vmem:[#allocation3] sm:$0xff]
        %v515 = vld [vmem:[#allocation3 + $0x8] sm:$0xff]
        %v516 = vld [vmem:[#allocation3 + $0x10] sm:$0xff]
        %v517 = vld [vmem:[#allocation2] sm:$0xff]
        %v518 = vld [vmem:[#allocation2 + $0x8] sm:$0xff]
        %v519 = vld [vmem:[#allocation2 + $0x10] sm:$0xff]
        %520 = vset.pattern.permute.xlu0 2
        %521 = vperm.xlu0 %520, %v459
        %v522 = vpop.permute.xlu0 %521
        %v524 = vmul.f32 %v522, %v517
        %v525 = vmul.f32 %v522, %v518
        %v526 = vmul.f32 %v522, %v519
        %530 = vrot.lane.b32.xlu0 %v524, 126
        %v531 = vpop.permute.xlu0 %530
        %532 = vrot.lane.b32.xlu0 %v525, 126
        %v533 = vpop.permute.xlu0 %532
        %534 = vrot.lane.b32.xlu0 %v526, 126
        %v535 = vpop.permute.xlu0 %534
        %vm536 = vcmask 1031168
        %v537 = vsel %vm536, %v531, %v533
        %v538 = vsel %vm536, %v533, %v535
        %v542 = vadd.f32 %v514, %v537
        %v543 = vadd.f32 %v515, %v538
        %v544 = vadd.f32 %v516, %v535
        %545 = vst [vmem:[#allocation3] sm:$0xff] %v542
        %546 = vst [vmem:[#allocation3 + $0x8] sm:$0xff] %v543
        %547 = vst.msk [vmem:[#allocation3 + $0x10] sm:$0xff] %vm457, %v544
        %v548 = vld [vmem:[#allocation3] sm:$0xff]
        %v549 = vld [vmem:[#allocation3 + $0x8] sm:$0xff]
        %v550 = vld [vmem:[#allocation3 + $0x10] sm:$0xff]
        %v551 = vld [vmem:[#allocation2] sm:$0xff]
        %v552 = vld [vmem:[#allocation2 + $0x8] sm:$0xff]
        %v553 = vld [vmem:[#allocation2 + $0x10] sm:$0xff]
        %554 = vset.pattern.permute.xlu0 3
        %555 = vperm.xlu0 %554, %v459
        %v556 = vpop.permute.xlu0 %555
        %v558 = vmul.f32 %v556, %v551
        %v559 = vmul.f32 %v556, %v552
        %v560 = vmul.f32 %v556, %v553
        %564 = vrot.lane.b32.xlu0 %v558, 110
        %v565 = vpop.permute.xlu0 %564
        %566 = vrot.lane.b32.xlu0 %v559, 110
        %v567 = vpop.permute.xlu0 %566
        %568 = vrot.lane.b32.xlu0 %v560, 110
        %v569 = vpop.permute.xlu0 %568
        %vm570 = vcmask 900096
        %v571 = vsel %vm570, %v565, %v567
        %v572 = vsel %vm570, %v567, %v569
        %v576 = vadd.f32 %v548, %v571
        %v577 = vadd.f32 %v549, %v572
        %v578 = vadd.f32 %v550, %v569
        %579 = vst [vmem:[#allocation3] sm:$0xff] %v576
        %580 = vst [vmem:[#allocation3 + $0x8] sm:$0xff] %v577
        %581 = vst.msk [vmem:[#allocation3 + $0x10] sm:$0xff] %vm457, %v578
        %v582 = vld [vmem:[#allocation3] sm:$0xff]
        %v583 = vld [vmem:[#allocation3 + $0x8] sm:$0xff]
        %v584 = vld [vmem:[#allocation3 + $0x10] sm:$0xff]
        %v585 = vld [vmem:[#allocation2] sm:$0xff]
        %v586 = vld [vmem:[#allocation2 + $0x8] sm:$0xff]
        %v587 = vld [vmem:[#allocation2 + $0x10] sm:$0xff]
        %588 = vset.pattern.permute.xlu0 4
        %589 = vperm.xlu0 %588, %v459
        %v590 = vpop.permute.xlu0 %589
        %v592 = vmul.f32 %v590, %v585
        %v593 = vmul.f32 %v590, %v586
        %v594 = vmul.f32 %v590, %v587
        %598 = vrot.lane.b32.xlu0 %v592, 109
        %v599 = vpop.permute.xlu0 %598
        %600 = vrot.lane.b32.xlu0 %v593, 109
        %v601 = vpop.permute.xlu0 %600
        %602 = vrot.lane.b32.xlu0 %v594, 109
        %v603 = vpop.permute.xlu0 %602
        %vm604 = vcmask 891904
        %v605 = vsel %vm604, %v599, %v601
        %v606 = vsel %vm604, %v601, %v603
        %v610 = vadd.f32 %v582, %v605
        %v611 = vadd.f32 %v583, %v606
        %v612 = vadd.f32 %v584, %v603
        %613 = vst [vmem:[#allocation3] sm:$0xff] %v610
        %614 = vst [vmem:[#allocation3 + $0x8] sm:$0xff] %v611
        %615 = vst.msk [vmem:[#allocation3 + $0x10] sm:$0xff] %vm457, %v612
        %v616 = vld [vmem:[#allocation3] sm:$0xff]
        %v617 = vld [vmem:[#allocation3 + $0x8] sm:$0xff]
        %v618 = vld [vmem:[#allocation3 + $0x10] sm:$0xff]
        %v619 = vld [vmem:[#allocation2] sm:$0xff]
        %v620 = vld [vmem:[#allocation2 + $0x8] sm:$0xff]
        %v621 = vld [vmem:[#allocation2 + $0x10] sm:$0xff]
        %622 = vset.pattern.permute.xlu0 5
        %623 = vperm.xlu0 %622, %v459
        %v624 = vpop.permute.xlu0 %623
        %v626 = vmul.f32 %v624, %v619
        %v627 = vmul.f32 %v624, %v620
        %v628 = vmul.f32 %v624, %v621
        %632 = vrot.lane.b32.xlu0 %v626, 108
        %v633 = vpop.permute.xlu0 %632
        %634 = vrot.lane.b32.xlu0 %v627, 108
        %v635 = vpop.permute.xlu0 %634
        %636 = vrot.lane.b32.xlu0 %v628, 108
        %v637 = vpop.permute.xlu0 %636
        %vm638 = vcmask 883712
        %v639 = vsel %vm638, %v633, %v635
        %v640 = vsel %vm638, %v635, %v637
        %v644 = vadd.f32 %v616, %v639
        %v645 = vadd.f32 %v617, %v640
        %v646 = vadd.f32 %v618, %v637
        %647 = vst [vmem:[#allocation3] sm:$0xff] %v644
        %648 = vst [vmem:[#allocation3 + $0x8] sm:$0xff] %v645
        %649 = vst.msk [vmem:[#allocation3 + $0x10] sm:$0xff] %vm457, %v646
        %v650 = vld [vmem:[#allocation3] sm:$0xff]
        %v651 = vld [vmem:[#allocation3 + $0x8] sm:$0xff]
        %v652 = vld [vmem:[#allocation3 + $0x10] sm:$0xff]
        %v653 = vld [vmem:[#allocation2] sm:$0xff]
        %v654 = vld [vmem:[#allocation2 + $0x8] sm:$0xff]
        %v655 = vld [vmem:[#allocation2 + $0x10] sm:$0xff]
        %656 = vset.pattern.permute.xlu0 6
        %657 = vperm.xlu0 %656, %v459
        %v658 = vpop.permute.xlu0 %657
        %v660 = vmul.f32 %v658, %v653
        %v661 = vmul.f32 %v658, %v654
        %v662 = vmul.f32 %v658, %v655
        %666 = vrot.lane.b32.xlu0 %v660, 92
        %v667 = vpop.permute.xlu0 %666
        %668 = vrot.lane.b32.xlu0 %v661, 92
        %v669 = vpop.permute.xlu0 %668
        %670 = vrot.lane.b32.xlu0 %v662, 92
        %v671 = vpop.permute.xlu0 %670
        %vm672 = vcmask 752640
        %v673 = vsel %vm672, %v667, %v669
        %v674 = vsel %vm672, %v669, %v671
        %v678 = vadd.f32 %v650, %v673
        %v679 = vadd.f32 %v651, %v674
        %v680 = vadd.f32 %v652, %v671
        %681 = vst [vmem:[#allocation3] sm:$0xff] %v678
        %682 = vst [vmem:[#allocation3 + $0x8] sm:$0xff] %v679
        %683 = vst.msk [vmem:[#allocation3 + $0x10] sm:$0xff] %vm457, %v680
        %v684 = vld [vmem:[#allocation3] sm:$0xff]
        %v685 = vld [vmem:[#allocation3 + $0x8] sm:$0xff]
        %v686 = vld [vmem:[#allocation3 + $0x10] sm:$0xff]
        %v687 = vld [vmem:[#allocation2] sm:$0xff]
        %v688 = vld [vmem:[#allocation2 + $0x8] sm:$0xff]
        %v689 = vld [vmem:[#allocation2 + $0x10] sm:$0xff]
        %690 = vset.pattern.permute.xlu0 7
        %691 = vperm.xlu0 %690, %v459
        %v692 = vpop.permute.xlu0 %691
        %v694 = vmul.f32 %v692, %v687
        %v695 = vmul.f32 %v692, %v688
        %v696 = vmul.f32 %v692, %v689
        %700 = vrot.lane.b32.xlu0 %v694, 91
        %v701 = vpop.permute.xlu0 %700
        %702 = vrot.lane.b32.xlu0 %v695, 91
        %v703 = vpop.permute.xlu0 %702
        %704 = vrot.lane.b32.xlu0 %v696, 91
        %v705 = vpop.permute.xlu0 %704
        %vm706 = vcmask 744448
        %v707 = vsel %vm706, %v701, %v703
        %v708 = vsel %vm706, %v703, %v705
        %v712 = vadd.f32 %v684, %v707
        %v713 = vadd.f32 %v685, %v708
        %v714 = vadd.f32 %v686, %v705
        %715 = vst [vmem:[#allocation3] sm:$0xff] %v712
        %716 = vst [vmem:[#allocation3 + $0x8] sm:$0xff] %v713
        %717 = vst.msk [vmem:[#allocation3 + $0x10] sm:$0xff] %vm457, %v714
        %v718 = vld [vmem:[#allocation3] sm:$0xff]
        %v719 = vld [vmem:[#allocation3 + $0x8] sm:$0xff]
        %v720 = vld [vmem:[#allocation3 + $0x10] sm:$0xff]
        %v721 = vld [vmem:[#allocation2] sm:$0xff]
        %v722 = vld [vmem:[#allocation2 + $0x8] sm:$0xff]
        %v723 = vld [vmem:[#allocation2 + $0x10] sm:$0xff]
        %724 = vset.pattern.permute.xlu0 8
        %725 = vperm.xlu0 %724, %v459
        %v726 = vpop.permute.xlu0 %725
        %v728 = vmul.f32 %v726, %v721
        %v729 = vmul.f32 %v726, %v722
        %v730 = vmul.f32 %v726, %v723
        %734 = vrot.lane.b32.xlu0 %v728, 90
        %v735 = vpop.permute.xlu0 %734
        %736 = vrot.lane.b32.xlu0 %v729, 90
        %v737 = vpop.permute.xlu0 %736
        %738 = vrot.lane.b32.xlu0 %v730, 90
        %v739 = vpop.permute.xlu0 %738
        %vm740 = vcmask 736256
        %v741 = vsel %vm740, %v735, %v737
        %v742 = vsel %vm740, %v737, %v739
        %v746 = vadd.f32 %v718, %v741
        %v747 = vadd.f32 %v719, %v742
        %v748 = vadd.f32 %v720, %v739
        %749 = vst [vmem:[#allocation3] sm:$0xff] %v746
        %750 = vst [vmem:[#allocation3 + $0x8] sm:$0xff] %v747
        %751 = vst.msk [vmem:[#allocation3 + $0x10] sm:$0xff] %vm457, %v748
        %v752 = vld [vmem:[#allocation3] sm:$0xff]
        %vm753 = vcmask 130048
        %754 = vst.msk [vmem:[%s286] sm:$0xff] %vm753, %v752
        %v755 = vld [vmem:[#allocation3] sm:$0xff]
        %757 = vrot.lane.b32.xlu0 %v755, 126
        %v758 = vpop.permute.xlu0 %757
        %vm760 = vcmask 261248
        %761 = vst.msk [vmem:[%s286] sm:$0xff] %vm760, %v758
        %v762 = vld [vmem:[#allocation3] sm:$0xff]
        %764 = vrot.lane.b32.xlu0 %v762, 124
        %v765 = vpop.permute.xlu0 %764
        %vm767 = vcmask 392448
        %768 = vst.msk [vmem:[%s286] sm:$0xff] %vm767, %v765
        %v769 = vld [vmem:[#allocation3] sm:$0xff]
        %771 = vrot.lane.b32.xlu0 %v769, 122
        %v772 = vpop.permute.xlu0 %771
        %vm774 = vcmask 523648
        %775 = vst.msk [vmem:[%s286] sm:$0xff] %vm774, %v772
        %v776 = vld [vmem:[#allocation3] sm:$0xff]
        %778 = vrot.lane.b32.xlu0 %v776, 120
        %v779 = vpop.permute.xlu0 %778
        %vm781 = vcmask 654848
        %782 = vst.msk [vmem:[%s286] sm:$0xff] %vm781, %v779
        %v783 = vld [vmem:[#allocation3] sm:$0xff]
        %785 = vrot.lane.b32.xlu0 %v783, 118
        %v786 = vpop.permute.xlu0 %785
        %vm788 = vcmask 786048
        %789 = vst.msk [vmem:[%s286] sm:$0xff] %vm788, %v786
        %v790 = vld [vmem:[#allocation3] sm:$0xff]
        %792 = vrot.lane.b32.xlu0 %v790, 116
        %v793 = vpop.permute.xlu0 %792
        %vm795 = vcmask 917248
        %796 = vst.msk [vmem:[%s286] sm:$0xff] %vm795, %v793
        %v797 = vld [vmem:[#allocation3] sm:$0xff]
        %v798 = vld [vmem:[#allocation3 + $0x8] sm:$0xff]
        %801 = vrot.lane.b32.xlu0 %v797, 114
        %v802 = vpop.permute.xlu0 %801
        %803 = vrot.lane.b32.xlu0 %v798, 114
        %v804 = vpop.permute.xlu0 %803
        %vm805 = vcmask 932864
        %v806 = vsel %vm805, %v802, %v804
        %vm808 = vcmask 1048448
        %809 = vst.msk [vmem:[%s286] sm:$0xff] %vm808, %v806
        %v810 = vld [vmem:[#allocation3 + $0x8] sm:$0xff]
        %812 = vrot.lane.b32.xlu0 %v810, 112
        %v813 = vpop.permute.xlu0 %812
        %815 = vst.msk [vmem:[%s286 + $0x8] sm:$0xff] %vm753, %v813
        %v816 = vld [vmem:[#allocation3 + $0x8] sm:$0xff]
        %818 = vrot.lane.b32.xlu0 %v816, 110
        %v819 = vpop.permute.xlu0 %818
        %821 = vst.msk [vmem:[%s286 + $0x8] sm:$0xff] %vm760, %v819
        %v822 = vld [vmem:[#allocation3 + $0x8] sm:$0xff]
        %824 = vrot.lane.b32.xlu0 %v822, 108
        %v825 = vpop.permute.xlu0 %824
        %827 = vst.msk [vmem:[%s286 + $0x8] sm:$0xff] %vm767, %v825
        %v828 = vld [vmem:[#allocation3 + $0x8] sm:$0xff]
        %830 = vrot.lane.b32.xlu0 %v828, 106
        %v831 = vpop.permute.xlu0 %830
        %833 = vst.msk [vmem:[%s286 + $0x8] sm:$0xff] %vm774, %v831
        %v834 = vld [vmem:[#allocation3 + $0x8] sm:$0xff]
        %836 = vrot.lane.b32.xlu0 %v834, 104
        %v837 = vpop.permute.xlu0 %836
        %839 = vst.msk [vmem:[%s286 + $0x8] sm:$0xff] %vm781, %v837
        %v840 = vld [vmem:[#allocation3 + $0x8] sm:$0xff]
        %842 = vrot.lane.b32.xlu0 %v840, 102
        %v843 = vpop.permute.xlu0 %842
        %845 = vst.msk [vmem:[%s286 + $0x8] sm:$0xff] %vm788, %v843
        %v846 = vld [vmem:[#allocation3 + $0x8] sm:$0xff]
        %v847 = vld [vmem:[#allocation3 + $0x10] sm:$0xff]
        %850 = vrot.lane.b32.xlu0 %v846, 100
        %v851 = vpop.permute.xlu0 %850
        %852 = vrot.lane.b32.xlu0 %v847, 100
        %v853 = vpop.permute.xlu0 %852
        %vm854 = vcmask 818176
        %v855 = vsel %vm854, %v851, %v853
        %857 = vst.msk [vmem:[%s286 + $0x8] sm:$0xff] %vm795, %v855
        %v858 = vld [vmem:[#allocation3 + $0x10] sm:$0xff]
        %860 = vrot.lane.b32.xlu0 %v858, 98
        %v861 = vpop.permute.xlu0 %860
        %863 = vst.msk [vmem:[%s286 + $0x8] sm:$0xff] %vm808, %v861
        %s864 = sand.u32 %s149, 1
        %s865 = scalar_lea.sflag [#allocation6], %s864
        %s866 = sand.u32 %s149, 1
        %s867 = smul.addr %s866, 16
        %s868 = scalar_lea.vmem [#allocation12], %s867
        // Predicated region
        $region53: #{tpu_custom_call.1} parent=35 // pred_check
          %p869 = pneg %p159
        $region54: #{tpu_custom_call.1} parent=35 // pred_check_branch
          %871 = sbr.rel (%p869) target = $region56
        $region55: #{tpu_custom_call.1} parent=35 // pred_region
          %s873 = ssub.s32 256, 256
          %874 = vsyncadd %s865, %s873
          %s875 = smul.addr %s28, 2
          %s876 = smul.addr %s27, 2
          %s877 = sadd.s32 %s875, %s876
          %s878 = smul.addr %s877, 128
          %s879 = scalar_lea.hbm %s4, %s878
          %s881 = sshll.u32 %s868, 4
          %s882 = int_to_ptr.vmem [resolvable:$true] %s881
          %884 = dma.vmem_to_hbm [thread:$0]  %s882, 256, %s879, %s865
        $region56: #{tpu_custom_call.1} parent=35 // pred_fallthru
          _
      $region36: #{tpu_custom_call.1} parent=5 // pred_fallthru
        _
      %p885 = scmp.le.s32.totalorder 2, %s18
      // Predicated region
      $region57: #{tpu_custom_call.1} parent=5 // pred_check
        %p886 = pneg %p885
      $region58: #{tpu_custom_call.1} parent=5 // pred_check_branch
        %888 = sbr.rel (%p886) target = $region60
      $region59: #{tpu_custom_call.1} parent=5 // pred_region
        %s889 = ssub.s32 %s18, 2
        // Predicated region
        $region61: #{tpu_custom_call.1} parent=59 // pred_check
          %p890 = pneg %p165
        $region62: #{tpu_custom_call.1} parent=59 // pred_check_branch
          %892 = sbr.rel (%p890) target = $region64
        $region63: #{tpu_custom_call.1} parent=59 // pred_region
          %s893 = sand.u32 %s150, 1
          %s894 = scalar_lea.sflag [#allocation6], %s893
          %s895 = sand.u32 %s150, 1
          %s896 = smul.addr %s895, 16
          %s897 = scalar_lea.vmem [#allocation12], %s896
          %898 = dma.done %s894, 256
        $region64: #{tpu_custom_call.1} parent=59 // pred_fallthru
          _
      $region60: #{tpu_custom_call.1} parent=5 // pred_fallthru
        _
    $region6: #{tpu_custom_call.1} parent=1 // loop_footer
      %s22 = sadd.s32 1, %s18
    $region7: #{tpu_custom_call.1} parent=1 // loop_footer_branch
      %17 = sbr.rel target = $region3
    $region8: #{tpu_custom_call.1} parent=1 // loop_exit
      _
    %899 = vsyncpa [#allocation5], 1
    %s900 = scalar_lea.sflag [#allocation5], 1
    %901 = vsyncpa %s900, 1
    %902 = vsyncpa [#allocation8], 1
    %903 = vsyncpa [#allocation11], 1
    %904 = vsyncpa [#allocation6], 1
    %s905 = scalar_lea.sflag [#allocation6], 1
    %906 = vsyncpa %s905, 1

</llo_original>
